<compile_context>
chip_gen: v5e
topology: v5e:2x2
jax: 0.10.0
libtpu: 0.0.40
codegen_flags: <defaults>
</compile_context>

<pallas_src>
import math

import jax
import jax.numpy as jnp
from jax.experimental import pallas as pl
from jax.experimental.pallas import tpu as pltpu


def _round_up(x, m):
    return ((x + m - 1) // m) * m


# ----------------------------- Pallas kernel --------------------------------

def jodie_kernel(cu_ref, ci_ref, feat_ref,
                 u_wihe_ref, u_wihf_ref, u_whh_ref, u_bi_ref, u_bhn_ref,
                 i_wihe_ref, i_wihf_ref, i_whh_ref, i_bi_ref, i_bhn_ref,
                 p_we_ref, p_wf_ref, p_b_ref,
                 upd_ref, pred_ref):
    """One batch tile of the JODIE forward pass.

    Activations arrive in f32 (hidden state is kept exact in the residual
    `z * h` term); bf16 copies are used only as MXU operands.  Weight matrices
    are bf16 and gate-fused (K, 3E); matmuls accumulate in f32.
    """
    cu = cu_ref[...]              # (TB, E) f32  user hidden state
    ci = ci_ref[...]              # (TB, E) f32  item hidden state
    feat = feat_ref[...]          # (TB, F) f32

    cu_b = cu.astype(jnp.bfloat16)
    ci_b = ci.astype(jnp.bfloat16)
    feat_b = feat.astype(jnp.bfloat16)

    E = cu.shape[-1]

    def mm(a, w):
        return jnp.dot(a, w, preferred_element_type=jnp.float32)

    def gru(x_e, h_b, h_f32, wihe, wihf, whh, b_i, b_hn):
        # nn.GRUCell semantics, gates (r, z, n) fused along the lane axis.
        gi = mm(x_e, wihe[...]) + mm(feat_b, wihf[...]) + b_i[...]   # (TB, 3E)
        gh = mm(h_b, whh[...])                                       # (TB, 3E)
        rz = jax.nn.sigmoid(gi[:, :2 * E] + gh[:, :2 * E])
        r = rz[:, :E]
        z = rz[:, E:]
        n = jnp.tanh(gi[:, 2 * E:] + r * (gh[:, 2 * E:] + b_hn[...]))
        return (1.0 - z) * n + z * h_f32

    # user GRU: input = [item_embed, feat], hidden = user_embed
    h_u = gru(ci_b, cu_b, cu, u_wihe_ref, u_wihf_ref, u_whh_ref, u_bi_ref, u_bhn_ref)
    # item GRU: input = [user_embed, feat], hidden = item_embed
    h_i = gru(cu_b, ci_b, ci, i_wihe_ref, i_wihf_ref, i_whh_ref, i_bi_ref, i_bhn_ref)

    # f32 output slab: [upd_user | upd_item]
    upd_ref[...] = jnp.concatenate([h_u, h_i], axis=-1)

    h_u_b = h_u.astype(jnp.bfloat16)
    h_i_b = h_i.astype(jnp.bfloat16)

    # Fused projections, output columns [pred_user | pred_item]:
    #   pred_user = item_projection([h_i, feat])
    #   pred_item = user_projection([h_u, feat])
    pred = (jnp.concatenate([mm(h_i_b, p_we_ref[1]), mm(h_u_b, p_we_ref[0])],
                            axis=-1)
            + mm(feat_b, p_wf_ref[...]) + p_b_ref[...])
    pred_ref[...] = pred.astype(pred_ref.dtype)


# ------------------------------ Python wrapper -------------------------------

def _choose_tile(B, block_b):
    b_aligned = _round_up(B, 16)
    tb = min(block_b, b_aligned)
    # v7x: keep at least 2 grid steps (when the batch allows) so the
    # "parallel" batch axis can split across both TensorCores.  No-op on
    # single-TC v5e/v6e.
    if b_aligned >= 32:
        tb = min(tb, _round_up(-(-b_aligned // 2), 16))
    bp = _round_up(B, tb)
    return tb, bp


def jodie_forward(packed, features, current_user_embeds, current_item_embeds,
                  *, block_b=1024):
    B, E = current_user_embeds.shape
    F = features.shape[-1]

    # Dropout is identity (eval mode).
    tb, bp = _choose_tile(B, block_b)
    pad = bp - B

    def prep(x):
        # Keep activations in f32 (no wrapper cast pass); pad only if needed.
        if pad:
            x = jnp.pad(x, ((0, pad), (0, 0)))
        return x

    acts = (prep(current_user_embeds), prep(current_item_embeds), prep(features))

    weight_names = ("u_wih_e", "u_wih_f", "u_whh", "u_bi", "u_bhn",
                    "i_wih_e", "i_wih_f", "i_whh", "i_bi", "i_bhn",
                    "proj_we", "proj_wf", "proj_b")
    weights = tuple(packed[k] for k in weight_names)

    grid = (bp // tb,)

    def row_spec(d):
        return pl.BlockSpec((tb, d), lambda b: (b, 0))

    def resident_spec(shape):
        nd = len(shape)
        return pl.BlockSpec(shape, lambda b, _nd=nd: (0,) * _nd)

    in_specs = ([row_spec(E), row_spec(E), row_spec(F)]
                + [resident_spec(tuple(w.shape)) for w in weights])
    out_specs = [row_spec(2 * E), row_spec(2 * E)]
    out_shape = (jax.ShapeDtypeStruct((bp, 2 * E), jnp.float32),
                 jax.ShapeDtypeStruct((bp, 2 * E), jnp.bfloat16))

    # Cost estimate (per row: two gate-fused GRUs + fused projections).
    flops = bp * (28 * E * E + 16 * E * F)
    weight_bytes = sum(int(w.size) * w.dtype.itemsize for w in weights)
    act_in_bytes = bp * (2 * E + F) * 4
    act_out_bytes = bp * 2 * E * 4 + bp * 2 * E * 2
    cost = pl.CostEstimate(flops=int(flops),
                           transcendentals=int(6 * bp * E),
                           bytes_accessed=int(act_in_bytes + act_out_bytes
                                              + weight_bytes))

    # VMEM budget: double-buffered activation tiles + resident weights + slack.
    per_step = (tb * (2 * E + F) * 4) + (tb * 2 * E * 4 + tb * 2 * E * 2)
    vmem_limit = int(min(48 * 1024 * 1024,
                         max(8 * 1024 * 1024, 6 * per_step + 4 * weight_bytes)))

    fn = pl.pallas_call(
        jodie_kernel,
        grid=grid,
        in_specs=in_specs,
        out_specs=out_specs,
        out_shape=out_shape,
        compiler_params=pltpu.CompilerParams(
            dimension_semantics=("parallel",),
            vmem_limit_bytes=vmem_limit,
        ),
        cost_estimate=cost,
    )
    upd, pred = fn(*acts, *weights)
    upd = upd[:B]
    pred = pred[:B]
    upd_u = upd[:, :E]
    upd_i = upd[:, E:]
    pred_u = pred[:, :E]
    pred_i = pred[:, E:]
    return upd_u, upd_i, pred_u, pred_i


# --------------------------- parameter construction --------------------------

def xavier_uniform(key, shape):
    fan_out, fan_in = shape
    bound = math.sqrt(6.0 / (fan_in + fan_out))
    return jax.random.uniform(key, shape, jnp.float32, -bound, bound)


def gru_uniform(key, shape, hidden):
    bound = 1.0 / math.sqrt(hidden)
    return jax.random.uniform(key, shape, jnp.float32, -bound, bound)


def init_raw_params(key, n_users, n_items, embed_dim, feature_dim):
    """Parameters in the PyTorch module's native layouts."""
    E, F = embed_dim, feature_dim
    rnn_in = E + F
    ks = jax.random.split(key, 12)
    return {
        "user_emb": xavier_uniform(ks[0], (n_users, E)),
        "item_emb": xavier_uniform(ks[1], (n_items, E)),
        # nn.GRUCell: weight_ih (3E, in), weight_hh (3E, E), gate order (r,z,n)
        "u_w_ih": gru_uniform(ks[2], (3 * E, rnn_in), E),
        "u_w_hh": gru_uniform(ks[3], (3 * E, E), E),
        "u_b_ih": gru_uniform(ks[4], (3 * E,), E),
        "u_b_hh": gru_uniform(ks[5], (3 * E,), E),
        "i_w_ih": gru_uniform(ks[6], (3 * E, rnn_in), E),
        "i_w_hh": gru_uniform(ks[7], (3 * E, E), E),
        "i_b_ih": gru_uniform(ks[8], (3 * E,), E),
        "i_b_hh": gru_uniform(ks[9], (3 * E,), E),
        # nn.Linear: weight (E, E+F), bias zeros
        "up_w": xavier_uniform(ks[10], (E, E + F)),
        "up_b": jnp.zeros((E,), jnp.float32),
        "ip_w": xavier_uniform(ks[11], (E, E + F)),
        "ip_b": jnp.zeros((E,), jnp.float32),
    }


def pack_params(raw, embed_dim, feature_dim):
    """Re-pack PyTorch-layout weights into gate-fused, bf16 kernel layouts.

    Done once, outside the forward path (no per-call cast/reshape traffic).
    """
    E, F = embed_dim, feature_dim
    bf16 = lambda w: w.astype(jnp.bfloat16)

    def split_ih(w_ih):            # (3E, E+F) -> (E, 3E) embed part, (F, 3E) feat part
        wt = w_ih.T                # (E+F, 3E), gate order (r,z,n) along columns
        return wt[:E], wt[E:]

    def fused_bias(b_ih, b_hh):
        # Fold r,z hidden biases into the input-side bias; the n-gate b_hh
        # must stay separate (it sits inside r * (h @ W_hn + b_hn)).
        b_i = jnp.concatenate([b_ih[:2 * E] + b_hh[:2 * E], b_ih[2 * E:]])
        return b_i.reshape(1, 3 * E), b_hh[2 * E:].reshape(1, E)

    u_e, u_f = split_ih(raw["u_w_ih"])
    i_e, i_f = split_ih(raw["i_w_ih"])
    u_bi, u_bhn = fused_bias(raw["u_b_ih"], raw["u_b_hh"])
    i_bi, i_bhn = fused_bias(raw["i_b_ih"], raw["i_b_hh"])

    return {
        "u_wih_e": bf16(u_e), "u_wih_f": bf16(u_f), "u_whh": bf16(raw["u_w_hh"].T),
        "u_bi": u_bi, "u_bhn": u_bhn,
        "i_wih_e": bf16(i_e), "i_wih_f": bf16(i_f), "i_whh": bf16(raw["i_w_hh"].T),
        "i_bi": i_bi, "i_bhn": i_bhn,
        # embed-projection stack: [0] user_projection (h_u -> pred_item),
        #                         [1] item_projection (h_i -> pred_user)
        "proj_we": bf16(jnp.stack([raw["up_w"][:, :E].T, raw["ip_w"][:, :E].T])),
        # fused feature weight, output columns [pred_user | pred_item]
        "proj_wf": bf16(jnp.concatenate([raw["ip_w"][:, E:].T,
                                         raw["up_w"][:, E:].T], axis=-1)),
        "proj_b": jnp.concatenate([raw["ip_b"], raw["up_b"]]).reshape(1, 2 * E),
    }


# ------------------------------ pure-JAX reference ---------------------------

def jodie_reference(raw, features, cu, ci):
    """f32 reference in PyTorch weight layout (validates the re-packing too)."""

    def gru_cell(x, h, w_ih, w_hh, b_ih, b_hh):
        gi = x @ w_ih.T + b_ih
        gh = h @ w_hh.T + b_hh
        i_r, i_z, i_n = jnp.split(gi, 3, axis=-1)
        h_r, h_z, h_n = jnp.split(gh, 3, axis=-1)
        r = jax.nn.sigmoid(i_r + h_r)
        z = jax.nn.sigmoid(i_z + h_z)
        n = jnp.tanh(i_n + r * h_n)
        return (1.0 - z) * n + z * h

    user_in = jnp.concatenate([ci, features], axis=-1)
    item_in = jnp.concatenate([cu, features], axis=-1)
    h_u = gru_cell(user_in, cu, raw["u_w_ih"], raw["u_w_hh"],
                   raw["u_b_ih"], raw["u_b_hh"])
    h_i = gru_cell(item_in, ci, raw["i_w_ih"], raw["i_w_hh"],
                   raw["i_b_ih"], raw["i_b_hh"])
    pred_item = jnp.concatenate([h_u, features], -1) @ raw["up_w"].T + raw["up_b"]
    pred_user = jnp.concatenate([h_i, features], -1) @ raw["ip_w"].T + raw["ip_b"]
    return h_u, h_i, pred_user, pred_item


# ----------------------------------- main ------------------------------------

if __name__ == "__main__":
    n_users, n_items = 16, 24
    embed_dim, feature_dim = 32, 16
    batch = 8

    key = jax.random.PRNGKey(0)
    pkey, ukey, ikey, fkey = jax.random.split(key, 4)
    raw = init_raw_params(pkey, n_users, n_items, embed_dim, feature_dim)
    packed = pack_params(raw, embed_dim, feature_dim)

    user_ids = jax.random.randint(ukey, (batch,), 0, n_users)
    item_ids = jax.random.randint(ikey, (batch,), 0, n_items)
    features = jax.random.normal(fkey, (batch, feature_dim), jnp.float32)

    # get_embeddings equivalent (gather stays in plain JAX glue)
    current_user_embeds = raw["user_emb"][user_ids]
    current_item_embeds = raw["item_emb"][item_ids]

    outs = jodie_forward(packed, features, current_user_embeds, current_item_embeds)
    outs = jax.block_until_ready(outs)

    refs = jodie_reference(raw, features, current_user_embeds, current_item_embeds)
    names = ("updated_user", "updated_item", "pred_next_user", "pred_next_item")
    for name, o, r in zip(names, outs, refs):
        assert o.shape == (batch, embed_dim), name
        err = float(jnp.max(jnp.abs(o.astype(jnp.float32) - r)))
        # bf16 MXU operands / bf16 prediction writeback vs pure-f32 reference
        assert err < 5e-2, f"{name} mismatch vs reference (max abs err={err})"

    print("KERNEL_OK")
</pallas_src>

<mosaic_0001>
module attributes {stable_mosaic.version = 11 : i64} {
  func.func @jodie_kernel(%arg0: i32, %arg1: memref<16x32xf32, #tpu.memory_space<vmem>>, %arg2: memref<16x32xf32, #tpu.memory_space<vmem>>, %arg3: memref<16x16xf32, #tpu.memory_space<vmem>>, %arg4: memref<32x96xbf16, #tpu.memory_space<vmem>>, %arg5: memref<16x96xbf16, #tpu.memory_space<vmem>>, %arg6: memref<32x96xbf16, #tpu.memory_space<vmem>>, %arg7: memref<1x96xf32, #tpu.memory_space<vmem>>, %arg8: memref<1x32xf32, #tpu.memory_space<vmem>>, %arg9: memref<32x96xbf16, #tpu.memory_space<vmem>>, %arg10: memref<16x96xbf16, #tpu.memory_space<vmem>>, %arg11: memref<32x96xbf16, #tpu.memory_space<vmem>>, %arg12: memref<1x96xf32, #tpu.memory_space<vmem>>, %arg13: memref<1x32xf32, #tpu.memory_space<vmem>>, %arg14: memref<2x32x32xbf16, #tpu.memory_space<vmem>>, %arg15: memref<16x64xbf16, #tpu.memory_space<vmem>>, %arg16: memref<1x64xf32, #tpu.memory_space<vmem>>, %arg17: memref<16x64xf32, #tpu.memory_space<vmem>>, %arg18: memref<16x64xbf16, #tpu.memory_space<vmem>>) attributes {dimension_semantics = [#tpu.dimension_semantics<parallel>], iteration_bounds = array<i64: 1>, scalar_prefetch = 0 : i64, scratch_operands = 0 : i64, tpu.core_type = #tpu.core_type<tc>, window_params = [{transform_indices = @transform_0, window_bounds = array<i64: 16, 32>}, {transform_indices = @transform_1, window_bounds = array<i64: 16, 32>}, {transform_indices = @transform_2, window_bounds = array<i64: 16, 16>}, {pipeline_mode = #tpu.pipeline_mode<synchronous>, transform_indices = @transform_3, window_bounds = array<i64: 32, 96>}, {pipeline_mode = #tpu.pipeline_mode<synchronous>, transform_indices = @transform_4, window_bounds = array<i64: 16, 96>}, {pipeline_mode = #tpu.pipeline_mode<synchronous>, transform_indices = @transform_5, window_bounds = array<i64: 32, 96>}, {pipeline_mode = #tpu.pipeline_mode<synchronous>, transform_indices = @transform_6, window_bounds = array<i64: 1, 96>}, {pipeline_mode = #tpu.pipeline_mode<synchronous>, transform_indices = @transform_7, window_bounds = array<i64: 1, 32>}, {pipeline_mode = #tpu.pipeline_mode<synchronous>, transform_indices = @transform_8, window_bounds = array<i64: 32, 96>}, {pipeline_mode = #tpu.pipeline_mode<synchronous>, transform_indices = @transform_9, window_bounds = array<i64: 16, 96>}, {pipeline_mode = #tpu.pipeline_mode<synchronous>, transform_indices = @transform_10, window_bounds = array<i64: 32, 96>}, {pipeline_mode = #tpu.pipeline_mode<synchronous>, transform_indices = @transform_11, window_bounds = array<i64: 1, 96>}, {pipeline_mode = #tpu.pipeline_mode<synchronous>, transform_indices = @transform_12, window_bounds = array<i64: 1, 32>}, {pipeline_mode = #tpu.pipeline_mode<synchronous>, transform_indices = @transform_13, window_bounds = array<i64: 2, 32, 32>}, {pipeline_mode = #tpu.pipeline_mode<synchronous>, transform_indices = @transform_14, window_bounds = array<i64: 16, 64>}, {pipeline_mode = #tpu.pipeline_mode<synchronous>, transform_indices = @transform_15, window_bounds = array<i64: 1, 64>}, {transform_indices = @transform_16, window_bounds = array<i64: 16, 64>}, {transform_indices = @transform_17, window_bounds = array<i64: 16, 64>}]} {
    %c0 = arith.constant 0 : index
    %c0_0 = arith.constant 0 : index
    %0 = vector.load %arg1[%c0, %c0_0] : memref<16x32xf32, #tpu.memory_space<vmem>>, vector<16x32xf32>
    %c0_1 = arith.constant 0 : index
    %c0_2 = arith.constant 0 : index
    %1 = vector.load %arg2[%c0_1, %c0_2] : memref<16x32xf32, #tpu.memory_space<vmem>>, vector<16x32xf32>
    %c0_3 = arith.constant 0 : index
    %c0_4 = arith.constant 0 : index
    %2 = vector.load %arg3[%c0_3, %c0_4] : memref<16x16xf32, #tpu.memory_space<vmem>>, vector<16x16xf32>
    %3 = arith.truncf %0 : vector<16x32xf32> to vector<16x32xbf16>
    %4 = arith.truncf %1 : vector<16x32xf32> to vector<16x32xbf16>
    %5 = arith.truncf %2 : vector<16x16xf32> to vector<16x16xbf16>
    %c0_5 = arith.constant 0 : index
    %c0_6 = arith.constant 0 : index
    %6 = vector.load %arg4[%c0_5, %c0_6] : memref<32x96xbf16, #tpu.memory_space<vmem>>, vector<32x96xbf16>
    %cst = arith.constant dense<0.000000e+00> : vector<16x96xf32>
    %7 = tpu.matmul %4, %6, %cst {dimension_numbers = #tpu.dot_dimension_numbers<[1], [0], [0], [1], [0, 0, 1, 1], [], []>} : vector<16x32xbf16>, vector<32x96xbf16>, vector<16x96xf32> -> vector<16x96xf32>
    %c0_7 = arith.constant 0 : index
    %c0_8 = arith.constant 0 : index
    %8 = vector.load %arg5[%c0_7, %c0_8] : memref<16x96xbf16, #tpu.memory_space<vmem>>, vector<16x96xbf16>
    %cst_9 = arith.constant dense<0.000000e+00> : vector<16x96xf32>
    %9 = tpu.matmul %5, %8, %cst_9 {dimension_numbers = #tpu.dot_dimension_numbers<[1], [0], [0], [1], [0, 0, 1, 1], [], []>} : vector<16x16xbf16>, vector<16x96xbf16>, vector<16x96xf32> -> vector<16x96xf32>
    %10 = arith.addf %7, %9 : vector<16x96xf32>
    %c0_10 = arith.constant 0 : index
    %c0_11 = arith.constant 0 : index
    %11 = vector.load %arg7[%c0_10, %c0_11] : memref<1x96xf32, #tpu.memory_space<vmem>>, vector<1x96xf32>
    %12 = vector.broadcast %11 : vector<1x96xf32> to vector<16x96xf32>
    %13 = arith.addf %10, %12 : vector<16x96xf32>
    %c0_12 = arith.constant 0 : index
    %c0_13 = arith.constant 0 : index
    %14 = vector.load %arg6[%c0_12, %c0_13] : memref<32x96xbf16, #tpu.memory_space<vmem>>, vector<32x96xbf16>
    %cst_14 = arith.constant dense<0.000000e+00> : vector<16x96xf32>
    %15 = tpu.matmul %3, %14, %cst_14 {dimension_numbers = #tpu.dot_dimension_numbers<[1], [0], [0], [1], [0, 0, 1, 1], [], []>} : vector<16x32xbf16>, vector<32x96xbf16>, vector<16x96xf32> -> vector<16x96xf32>
    %16 = vector.extract_strided_slice %13 {offsets = [0, 0], sizes = [16, 64], strides = [1, 1]} : vector<16x96xf32> to vector<16x64xf32>
    %17 = vector.extract_strided_slice %15 {offsets = [0, 0], sizes = [16, 64], strides = [1, 1]} : vector<16x96xf32> to vector<16x64xf32>
    %18 = arith.addf %16, %17 : vector<16x64xf32>
    %19 = arith.negf %18 : vector<16x64xf32>
    %20 = math.exp %19 : vector<16x64xf32>
    %cst_15 = arith.constant 1.000000e+00 : f32
    %21 = vector.broadcast %cst_15 : f32 to vector<16x64xf32>
    %22 = arith.addf %21, %20 : vector<16x64xf32>
    %23 = arith.divf %21, %22 : vector<16x64xf32>
    %24 = vector.extract_strided_slice %23 {offsets = [0, 0], sizes = [16, 32], strides = [1, 1]} : vector<16x64xf32> to vector<16x32xf32>
    %25 = vector.extract_strided_slice %23 {offsets = [0, 32], sizes = [16, 32], strides = [1, 1]} : vector<16x64xf32> to vector<16x32xf32>
    %26 = vector.extract_strided_slice %13 {offsets = [0, 64], sizes = [16, 32], strides = [1, 1]} : vector<16x96xf32> to vector<16x32xf32>
    %27 = vector.extract_strided_slice %15 {offsets = [0, 64], sizes = [16, 32], strides = [1, 1]} : vector<16x96xf32> to vector<16x32xf32>
    %c0_16 = arith.constant 0 : index
    %c0_17 = arith.constant 0 : index
    %28 = vector.load %arg8[%c0_16, %c0_17] : memref<1x32xf32, #tpu.memory_space<vmem>>, vector<1x32xf32>
    %29 = vector.broadcast %28 : vector<1x32xf32> to vector<16x32xf32>
    %30 = arith.addf %27, %29 : vector<16x32xf32>
    %31 = arith.mulf %24, %30 : vector<16x32xf32>
    %32 = arith.addf %26, %31 : vector<16x32xf32>
    %33 = math.tanh %32 : vector<16x32xf32>
    %cst_18 = arith.constant 1.000000e+00 : f32
    %34 = vector.broadcast %cst_18 : f32 to vector<16x32xf32>
    %35 = arith.subf %34, %25 : vector<16x32xf32>
    %36 = arith.mulf %35, %33 : vector<16x32xf32>
    %37 = arith.mulf %25, %0 : vector<16x32xf32>
    %38 = arith.addf %36, %37 : vector<16x32xf32>
    %c0_19 = arith.constant 0 : index
    %c0_20 = arith.constant 0 : index
    %39 = vector.load %arg9[%c0_19, %c0_20] : memref<32x96xbf16, #tpu.memory_space<vmem>>, vector<32x96xbf16>
    %cst_21 = arith.constant dense<0.000000e+00> : vector<16x96xf32>
    %40 = tpu.matmul %3, %39, %cst_21 {dimension_numbers = #tpu.dot_dimension_numbers<[1], [0], [0], [1], [0, 0, 1, 1], [], []>} : vector<16x32xbf16>, vector<32x96xbf16>, vector<16x96xf32> -> vector<16x96xf32>
    %c0_22 = arith.constant 0 : index
    %c0_23 = arith.constant 0 : index
    %41 = vector.load %arg10[%c0_22, %c0_23] : memref<16x96xbf16, #tpu.memory_space<vmem>>, vector<16x96xbf16>
    %cst_24 = arith.constant dense<0.000000e+00> : vector<16x96xf32>
    %42 = tpu.matmul %5, %41, %cst_24 {dimension_numbers = #tpu.dot_dimension_numbers<[1], [0], [0], [1], [0, 0, 1, 1], [], []>} : vector<16x16xbf16>, vector<16x96xbf16>, vector<16x96xf32> -> vector<16x96xf32>
    %43 = arith.addf %40, %42 : vector<16x96xf32>
    %c0_25 = arith.constant 0 : index
    %c0_26 = arith.constant 0 : index
    %44 = vector.load %arg12[%c0_25, %c0_26] : memref<1x96xf32, #tpu.memory_space<vmem>>, vector<1x96xf32>
    %45 = vector.broadcast %44 : vector<1x96xf32> to vector<16x96xf32>
    %46 = arith.addf %43, %45 : vector<16x96xf32>
    %c0_27 = arith.constant 0 : index
    %c0_28 = arith.constant 0 : index
    %47 = vector.load %arg11[%c0_27, %c0_28] : memref<32x96xbf16, #tpu.memory_space<vmem>>, vector<32x96xbf16>
    %cst_29 = arith.constant dense<0.000000e+00> : vector<16x96xf32>
    %48 = tpu.matmul %4, %47, %cst_29 {dimension_numbers = #tpu.dot_dimension_numbers<[1], [0], [0], [1], [0, 0, 1, 1], [], []>} : vector<16x32xbf16>, vector<32x96xbf16>, vector<16x96xf32> -> vector<16x96xf32>
    %49 = vector.extract_strided_slice %46 {offsets = [0, 0], sizes = [16, 64], strides = [1, 1]} : vector<16x96xf32> to vector<16x64xf32>
    %50 = vector.extract_strided_slice %48 {offsets = [0, 0], sizes = [16, 64], strides = [1, 1]} : vector<16x96xf32> to vector<16x64xf32>
    %51 = arith.addf %49, %50 : vector<16x64xf32>
    %52 = arith.negf %51 : vector<16x64xf32>
    %53 = math.exp %52 : vector<16x64xf32>
    %cst_30 = arith.constant 1.000000e+00 : f32
    %54 = vector.broadcast %cst_30 : f32 to vector<16x64xf32>
    %55 = arith.addf %54, %53 : vector<16x64xf32>
    %56 = arith.divf %54, %55 : vector<16x64xf32>
    %57 = vector.extract_strided_slice %56 {offsets = [0, 0], sizes = [16, 32], strides = [1, 1]} : vector<16x64xf32> to vector<16x32xf32>
    %58 = vector.extract_strided_slice %56 {offsets = [0, 32], sizes = [16, 32], strides = [1, 1]} : vector<16x64xf32> to vector<16x32xf32>
    %59 = vector.extract_strided_slice %46 {offsets = [0, 64], sizes = [16, 32], strides = [1, 1]} : vector<16x96xf32> to vector<16x32xf32>
    %60 = vector.extract_strided_slice %48 {offsets = [0, 64], sizes = [16, 32], strides = [1, 1]} : vector<16x96xf32> to vector<16x32xf32>
    %c0_31 = arith.constant 0 : index
    %c0_32 = arith.constant 0 : index
    %61 = vector.load %arg13[%c0_31, %c0_32] : memref<1x32xf32, #tpu.memory_space<vmem>>, vector<1x32xf32>
    %62 = vector.broadcast %61 : vector<1x32xf32> to vector<16x32xf32>
    %63 = arith.addf %60, %62 : vector<16x32xf32>
    %64 = arith.mulf %57, %63 : vector<16x32xf32>
    %65 = arith.addf %59, %64 : vector<16x32xf32>
    %66 = math.tanh %65 : vector<16x32xf32>
    %cst_33 = arith.constant 1.000000e+00 : f32
    %67 = vector.broadcast %cst_33 : f32 to vector<16x32xf32>
    %68 = arith.subf %67, %58 : vector<16x32xf32>
    %69 = arith.mulf %68, %66 : vector<16x32xf32>
    %70 = arith.mulf %58, %1 : vector<16x32xf32>
    %71 = arith.addf %69, %70 : vector<16x32xf32>
    %72 = tpu.concatenate %38, %71 in 1 : vector<16x32xf32>, vector<16x32xf32> -> vector<16x64xf32>
    %c0_34 = arith.constant 0 : index
    %c0_35 = arith.constant 0 : index
    %73 = vector.load %arg17[%c0_34, %c0_35] : memref<16x64xf32, #tpu.memory_space<vmem>>, vector<16x64xf32>
    tpu.vector_store %arg17[%c0_34, %c0_35], %72 {strides = array<i32>} : memref<16x64xf32, #tpu.memory_space<vmem>>, vector<16x64xf32>,
    %74 = arith.truncf %38 : vector<16x32xf32> to vector<16x32xbf16>
    %75 = arith.truncf %71 : vector<16x32xf32> to vector<16x32xbf16>
    %c1 = arith.constant 1 : index
    %c0_36 = arith.constant 0 : index
    %c0_37 = arith.constant 0 : index
    %76 = vector.load %arg14[%c1, %c0_36, %c0_37] : memref<2x32x32xbf16, #tpu.memory_space<vmem>>, vector<1x32x32xbf16>
    %77 = vector.shape_cast %76 : vector<1x32x32xbf16> to vector<32x32xbf16>
    %cst_38 = arith.constant dense<0.000000e+00> : vector<16x32xf32>
    %78 = tpu.matmul %75, %77, %cst_38 {dimension_numbers = #tpu.dot_dimension_numbers<[1], [0], [0], [1], [0, 0, 1, 1], [], []>} : vector<16x32xbf16>, vector<32x32xbf16>, vector<16x32xf32> -> vector<16x32xf32>
    %c0_39 = arith.constant 0 : index
    %c0_40 = arith.constant 0 : index
    %c0_41 = arith.constant 0 : index
    %79 = vector.load %arg14[%c0_39, %c0_40, %c0_41] : memref<2x32x32xbf16, #tpu.memory_space<vmem>>, vector<1x32x32xbf16>
    %80 = vector.shape_cast %79 : vector<1x32x32xbf16> to vector<32x32xbf16>
    %cst_42 = arith.constant dense<0.000000e+00> : vector<16x32xf32>
    %81 = tpu.matmul %74, %80, %cst_42 {dimension_numbers = #tpu.dot_dimension_numbers<[1], [0], [0], [1], [0, 0, 1, 1], [], []>} : vector<16x32xbf16>, vector<32x32xbf16>, vector<16x32xf32> -> vector<16x32xf32>
    %82 = tpu.concatenate %78, %81 in 1 : vector<16x32xf32>, vector<16x32xf32> -> vector<16x64xf32>
    %c0_43 = arith.constant 0 : index
    %c0_44 = arith.constant 0 : index
    %83 = vector.load %arg15[%c0_43, %c0_44] : memref<16x64xbf16, #tpu.memory_space<vmem>>, vector<16x64xbf16>
    %cst_45 = arith.constant dense<0.000000e+00> : vector<16x64xf32>
    %84 = tpu.matmul %5, %83, %cst_45 {dimension_numbers = #tpu.dot_dimension_numbers<[1], [0], [0], [1], [0, 0, 1, 1], [], []>} : vector<16x16xbf16>, vector<16x64xbf16>, vector<16x64xf32> -> vector<16x64xf32>
    %85 = arith.addf %82, %84 : vector<16x64xf32>
    %c0_46 = arith.constant 0 : index
    %c0_47 = arith.constant 0 : index
    %86 = vector.load %arg16[%c0_46, %c0_47] : memref<1x64xf32, #tpu.memory_space<vmem>>, vector<1x64xf32>
    %87 = vector.broadcast %86 : vector<1x64xf32> to vector<16x64xf32>
    %88 = arith.addf %85, %87 : vector<16x64xf32>
    %89 = arith.truncf %88 : vector<16x64xf32> to vector<16x64xbf16>
    %c0_48 = arith.constant 0 : index
    %c0_49 = arith.constant 0 : index
    %90 = vector.load %arg18[%c0_48, %c0_49] : memref<16x64xbf16, #tpu.memory_space<vmem>>, vector<16x64xbf16>
    tpu.vector_store %arg18[%c0_48, %c0_49], %89 {strides = array<i32>} : memref<16x64xbf16, #tpu.memory_space<vmem>>, vector<16x64xbf16>,
    return
  }
  func.func @transform_0(%arg0: i32) -> (i32, i32) {
    %c0_i32 = arith.constant 0 : i32
    %c0_i32_0 = arith.constant 0 : i32
    return %arg0, %c0_i32 : i32, i32
  }
  func.func @transform_1(%arg0: i32) -> (i32, i32) {
    %c0_i32 = arith.constant 0 : i32
    %c0_i32_0 = arith.constant 0 : i32
    return %arg0, %c0_i32 : i32, i32
  }
  func.func @transform_2(%arg0: i32) -> (i32, i32) {
    %c0_i32 = arith.constant 0 : i32
    %c0_i32_0 = arith.constant 0 : i32
    return %arg0, %c0_i32 : i32, i32
  }
  func.func @transform_3(%arg0: i32) -> (i32, i32) {
    %c0_i32 = arith.constant 0 : i32
    %c0_i32_0 = arith.constant 0 : i32
    %c0_i32_1 = arith.constant 0 : i32
    return %c0_i32, %c0_i32_0 : i32, i32
  }
  func.func @transform_4(%arg0: i32) -> (i32, i32) {
    %c0_i32 = arith.constant 0 : i32
    %c0_i32_0 = arith.constant 0 : i32
    %c0_i32_1 = arith.constant 0 : i32
    return %c0_i32, %c0_i32_0 : i32, i32
  }
  func.func @transform_5(%arg0: i32) -> (i32, i32) {
    %c0_i32 = arith.constant 0 : i32
    %c0_i32_0 = arith.constant 0 : i32
    %c0_i32_1 = arith.constant 0 : i32
    return %c0_i32, %c0_i32_0 : i32, i32
  }
  func.func @transform_6(%arg0: i32) -> (i32, i32) {
    %c0_i32 = arith.constant 0 : i32
    %c0_i32_0 = arith.constant 0 : i32
    %c0_i32_1 = arith.constant 0 : i32
    return %c0_i32, %c0_i32_0 : i32, i32
  }
  func.func @transform_7(%arg0: i32) -> (i32, i32) {
    %c0_i32 = arith.constant 0 : i32
    %c0_i32_0 = arith.constant 0 : i32
    %c0_i32_1 = arith.constant 0 : i32
    return %c0_i32, %c0_i32_0 : i32, i32
  }
  func.func @transform_8(%arg0: i32) -> (i32, i32) {
    %c0_i32 = arith.constant 0 : i32
    %c0_i32_0 = arith.constant 0 : i32
    %c0_i32_1 = arith.constant 0 : i32
    return %c0_i32, %c0_i32_0 : i32, i32
  }
  func.func @transform_9(%arg0: i32) -> (i32, i32) {
    %c0_i32 = arith.constant 0 : i32
    %c0_i32_0 = arith.constant 0 : i32
    %c0_i32_1 = arith.constant 0 : i32
    return %c0_i32, %c0_i32_0 : i32, i32
  }
  func.func @transform_10(%arg0: i32) -> (i32, i32) {
    %c0_i32 = arith.constant 0 : i32
    %c0_i32_0 = arith.constant 0 : i32
    %c0_i32_1 = arith.constant 0 : i32
    return %c0_i32, %c0_i32_0 : i32, i32
  }
  func.func @transform_11(%arg0: i32) -> (i32, i32) {
    %c0_i32 = arith.constant 0 : i32
    %c0_i32_0 = arith.constant 0 : i32
    %c0_i32_1 = arith.constant 0 : i32
    return %c0_i32, %c0_i32_0 : i32, i32
  }
  func.func @transform_12(%arg0: i32) -> (i32, i32) {
    %c0_i32 = arith.constant 0 : i32
    %c0_i32_0 = arith.constant 0 : i32
    %c0_i32_1 = arith.constant 0 : i32
    return %c0_i32, %c0_i32_0 : i32, i32
  }
  func.func @transform_13(%arg0: i32) -> (i32, i32, i32) {
    %c0_i32 = arith.constant 0 : i32
    %c0_i32_0 = arith.constant 0 : i32
    %c0_i32_1 = arith.constant 0 : i32
    %c0_i32_2 = arith.constant 0 : i32
    return %c0_i32, %c0_i32_0, %c0_i32_1 : i32, i32, i32
  }
  func.func @transform_14(%arg0: i32) -> (i32, i32) {
    %c0_i32 = arith.constant 0 : i32
    %c0_i32_0 = arith.constant 0 : i32
    %c0_i32_1 = arith.constant 0 : i32
    return %c0_i32, %c0_i32_0 : i32, i32
  }
  func.func @transform_15(%arg0: i32) -> (i32, i32) {
    %c0_i32 = arith.constant 0 : i32
    %c0_i32_0 = arith.constant 0 : i32
    %c0_i32_1 = arith.constant 0 : i32
    return %c0_i32, %c0_i32_0 : i32, i32
  }
  func.func @transform_16(%arg0: i32) -> (i32, i32) {
    %c0_i32 = arith.constant 0 : i32
    %c0_i32_0 = arith.constant 0 : i32
    return %arg0, %c0_i32 : i32, i32
  }
  func.func @transform_17(%arg0: i32) -> (i32, i32) {
    %c0_i32 = arith.constant 0 : i32
    %c0_i32_0 = arith.constant 0 : i32
    return %arg0, %c0_i32 : i32, i32
  }
}

</mosaic_0001>

<llo_original>
// kernel: tpu_custom_call.1
$region0: #{tpu_custom_call.1}
  #allocation0 [shape = 'u32[]', space=smem, size = 0x4, offset = 0x4, fixed_abs, tag = 'smem constant byte address 0x4 - core index']
  #allocation1 [shape = 'u32[72,128]{1,0:T(1,128)}', space=vmem, size = 0x9000, scoped, tag = 'internal scratch']
  %s0 = inlined_call_operand.hbm [shape: f32[16,32], index: 0, kind: input, shape index: {}]
  %s1 = inlined_call_operand.hbm [shape: f32[16,32], index: 1, kind: input, shape index: {}]
  %s2 = inlined_call_operand.hbm [shape: f32[16,16], index: 2, kind: input, shape index: {}]
  %s3 = inlined_call_operand.hbm [shape: bf16[32,96], index: 3, kind: input, shape index: {}]
  %s4 = inlined_call_operand.hbm [shape: bf16[16,96], index: 4, kind: input, shape index: {}]
  %s5 = inlined_call_operand.hbm [shape: bf16[32,96], index: 5, kind: input, shape index: {}]
  %s6 = inlined_call_operand.hbm [shape: f32[1,96], index: 6, kind: input, shape index: {}]
  %s7 = inlined_call_operand.hbm [shape: f32[1,32], index: 7, kind: input, shape index: {}]
  %s8 = inlined_call_operand.hbm [shape: bf16[32,96], index: 8, kind: input, shape index: {}]
  %s9 = inlined_call_operand.vmem [shape: bf16[16,96], index: 9, kind: input, shape index: {}]
  %s10 = inlined_call_operand.hbm [shape: bf16[32,96], index: 10, kind: input, shape index: {}]
  %s11 = inlined_call_operand.vmem [shape: f32[1,96], index: 11, kind: input, shape index: {}]
  %s12 = inlined_call_operand.vmem [shape: f32[1,32], index: 12, kind: input, shape index: {}]
  %s13 = inlined_call_operand.hbm [shape: bf16[2,32,32], index: 13, kind: input, shape index: {}]
  %s14 = inlined_call_operand.hbm [shape: bf16[16,64], index: 14, kind: input, shape index: {}]
  %s15 = inlined_call_operand.vmem [shape: f32[1,64], index: 15, kind: input, shape index: {}]
  %s16 = inlined_call_operand.hbm [shape: f32[16,64], index: 16, kind: output, shape index: {0}]
  %s17 = inlined_call_operand.hbm [shape: bf16[16,64], index: 17, kind: output, shape index: {1}]
  %18 = xla_tuple %s16, %s17
  %s19 = sld [smem:[#allocation0]]
  $region130: #{tpu_custom_call.1} parent=0
    _
  %s21 = ssub.s32 1, %s19
  %s22 = scalar_select 0, %s21, %s19
  $region1: #{tpu_custom_call.1} parent=0
    #allocation2 [shape = 'u8[8192]{0}', space=vmem, size = 0x2000, scoped, tag = 'input window, operand 0, single buffered']
    #allocation3 [shape = 's32[1]{0}', space=sflag, size = 0x4, scoped, tag = 'scoped memory for tpu_custom_call.1']
    #allocation4 [shape = 's32[1]{0}', space=sflag, size = 0x4, scoped, tag = 'scoped memory for tpu_custom_call.1']
    #allocation5 [shape = 'u8[8192]{0}', space=vmem, size = 0x2000, scoped, tag = 'input window, operand 1, single buffered']
    #allocation6 [shape = 's32[1]{0}', space=sflag, size = 0x4, scoped, tag = 'scoped memory for tpu_custom_call.1']
    #allocation7 [shape = 'u8[8192]{0}', space=vmem, size = 0x2000, scoped, tag = 'input window, operand 2, single buffered']
    #allocation8 [shape = 'u8[8192]{0}', space=vmem, size = 0x2000, scoped, tag = 'input window, operand 3, single buffered']
    #allocation9 [shape = 's32[1]{0}', space=sflag, size = 0x4, scoped, tag = 'scoped memory for tpu_custom_call.1']
    #allocation10 [shape = 'u8[4096]{0}', space=vmem, size = 0x1000, scoped, tag = 'input window, operand 4, single buffered']
    #allocation11 [shape = 'u8[8192]{0}', space=vmem, size = 0x2000, scoped, tag = 'input window, operand 5, single buffered']
    #allocation12 [shape = 's32[1]{0}', space=sflag, size = 0x4, scoped, tag = 'scoped memory for tpu_custom_call.1']
    #allocation13 [shape = 'u8[512]{0}', space=vmem, size = 0x400, scoped, tag = 'input window, operand 6, single buffered']
    #allocation14 [shape = 'u8[512]{0}', space=vmem, size = 0x400, scoped, tag = 'input window, operand 7, single buffered']
    #allocation15 [shape = 's32[1]{0}', space=sflag, size = 0x4, scoped, tag = 'scoped memory for tpu_custom_call.1']
    #allocation16 [shape = 'u8[8192]{0}', space=vmem, size = 0x2000, scoped, tag = 'input window, operand 8, single buffered']
    #allocation17 [shape = 'u8[8192]{0}', space=vmem, size = 0x2000, scoped, tag = 'input window, operand 10, single buffered']
    #allocation18 [shape = 's32[1]{0}', space=sflag, size = 0x4, scoped, tag = 'scoped memory for tpu_custom_call.1']
    #allocation19 [shape = 'u8[16384]{0}', space=vmem, size = 0x4000, scoped, tag = 'input window, operand 13, single buffered']
    #allocation20 [shape = 'u8[4096]{0}', space=vmem, size = 0x1000, scoped, tag = 'input window, operand 14, single buffered']
    #allocation21 [shape = 's32[1]{0}', space=sflag, size = 0x4, scoped, tag = 'scoped memory for tpu_custom_call.1']
    #allocation22 [shape = 'u8[8192]{0}', space=vmem, size = 0x2000, scoped, tag = 'output window, operand 0, single buffered']
    #allocation23 [shape = 'u8[4096]{0}', space=vmem, size = 0x1000, scoped, tag = 'output window, operand 1, single buffered']
    #allocation24 [shape = 's32[1]{0}', space=sflag, size = 0x4, scoped, tag = 'scoped memory for tpu_custom_call.1']
    %23 = vsyncpa [#allocation3], 0
    %24 = vsyncpa [#allocation6], 0
    %25 = vsyncpa [#allocation9], 0
    %26 = vsyncpa [#allocation12], 0
    %27 = vsyncpa [#allocation15], 0
    %28 = vsyncpa [#allocation18], 0
    %29 = vsyncpa [#allocation21], 0
    %30 = vsyncpa [#allocation4], 0
    %31 = vsyncpa [#allocation24], 0
    // Predicated region
    $region2: #{tpu_custom_call.1} parent=1 // pred_check
      _
    $region3: #{tpu_custom_call.1} parent=1 // pred_check_branch
      %33 = sbr.rel (0) target = $region5
    $region4: #{tpu_custom_call.1} parent=1 // pred_region
      %35 = vsyncadd [#allocation3], 0
      %s36 = sshll.u32 %s0, 4
      %s37 = int_to_ptr.hbm [resolvable:$true] %s36
      %s38 = sshll.u32 [#allocation2], 4
      %s39 = int_to_ptr.vmem [resolvable:$true] %s38
      %44 = dma.hbm_to_vmem [thread:$0]  %s37, 256, %s39, [#allocation3], 128, 128, 8
    $region5: #{tpu_custom_call.1} parent=1 // pred_fallthru
      _
    // Predicated region
    $region6: #{tpu_custom_call.1} parent=1 // pred_check
      _
    $region7: #{tpu_custom_call.1} parent=1 // pred_check_branch
      %46 = sbr.rel (0) target = $region9
    $region8: #{tpu_custom_call.1} parent=1 // pred_region
      %48 = vsyncadd [#allocation6], 0
      %s49 = sshll.u32 %s1, 4
      %s50 = int_to_ptr.hbm [resolvable:$true] %s49
      %s51 = sshll.u32 [#allocation5], 4
      %s52 = int_to_ptr.vmem [resolvable:$true] %s51
      %57 = dma.hbm_to_vmem [thread:$0]  %s50, 256, %s52, [#allocation6], 128, 128, 8
    $region9: #{tpu_custom_call.1} parent=1 // pred_fallthru
      _
    // Predicated region
    $region10: #{tpu_custom_call.1} parent=1 // pred_check
      _
    $region11: #{tpu_custom_call.1} parent=1 // pred_check_branch
      %59 = sbr.rel (0) target = $region13
    $region12: #{tpu_custom_call.1} parent=1 // pred_region
      %61 = vsyncadd [#allocation6], 0
      %s62 = sshll.u32 %s2, 4
      %s63 = int_to_ptr.hbm [resolvable:$true] %s62
      %s64 = sshll.u32 [#allocation7], 4
      %s65 = int_to_ptr.vmem [resolvable:$true] %s64
      %70 = dma.hbm_to_vmem [thread:$0]  %s63, 256, %s65, [#allocation6], 128, 128, 8
    $region13: #{tpu_custom_call.1} parent=1 // pred_fallthru
      _
    // Predicated region
    $region14: #{tpu_custom_call.1} parent=1 // pred_check
      _
    $region15: #{tpu_custom_call.1} parent=1 // pred_check_branch
      %72 = sbr.rel (0) target = $region17
    $region16: #{tpu_custom_call.1} parent=1 // pred_region
      %74 = vsyncadd [#allocation9], 0
      %s75 = sshll.u32 %s3, 4
      %s76 = int_to_ptr.hbm [resolvable:$true] %s75
      %s77 = sshll.u32 [#allocation8], 4
      %s78 = int_to_ptr.vmem [resolvable:$true] %s77
      %83 = dma.hbm_to_vmem [thread:$0]  %s76, 256, %s78, [#allocation9], 64, 64, 4
    $region17: #{tpu_custom_call.1} parent=1 // pred_fallthru
      _
    // Predicated region
    $region18: #{tpu_custom_call.1} parent=1 // pred_check
      _
    $region19: #{tpu_custom_call.1} parent=1 // pred_check_branch
      %85 = sbr.rel (0) target = $region21
    $region20: #{tpu_custom_call.1} parent=1 // pred_region
      %87 = vsyncadd [#allocation9], 0
      %s88 = sshll.u32 %s4, 4
      %s89 = int_to_ptr.hbm [resolvable:$true] %s88
      %s90 = sshll.u32 [#allocation10], 4
      %s91 = int_to_ptr.vmem [resolvable:$true] %s90
      %96 = dma.hbm_to_vmem [thread:$0]  %s89, 128, %s91, [#allocation9], 64, 64, 4
    $region21: #{tpu_custom_call.1} parent=1 // pred_fallthru
      _
    // Predicated region
    $region22: #{tpu_custom_call.1} parent=1 // pred_check
      _
    $region23: #{tpu_custom_call.1} parent=1 // pred_check_branch
      %98 = sbr.rel (0) target = $region25
    $region24: #{tpu_custom_call.1} parent=1 // pred_region
      %100 = vsyncadd [#allocation12], 0
      %s101 = sshll.u32 %s5, 4
      %s102 = int_to_ptr.hbm [resolvable:$true] %s101
      %s103 = sshll.u32 [#allocation11], 4
      %s104 = int_to_ptr.vmem [resolvable:$true] %s103
      %109 = dma.hbm_to_vmem [thread:$0]  %s102, 256, %s104, [#allocation12], 64, 64, 4
    $region25: #{tpu_custom_call.1} parent=1 // pred_fallthru
      _
    // Predicated region
    $region26: #{tpu_custom_call.1} parent=1 // pred_check
      _
    $region27: #{tpu_custom_call.1} parent=1 // pred_check_branch
      %111 = sbr.rel (0) target = $region29
    $region28: #{tpu_custom_call.1} parent=1 // pred_region
      %113 = vsyncadd [#allocation12], 0
      %s115 = sshll.u32 %s6, 4
      %s116 = int_to_ptr.hbm [resolvable:$true] %s115
      %s117 = sshll.u32 [#allocation13], 4
      %s118 = int_to_ptr.vmem [resolvable:$true] %s117
      %120 = dma.hbm_to_vmem [thread:$0]  %s116, 16, %s118, [#allocation12]
    $region29: #{tpu_custom_call.1} parent=1 // pred_fallthru
      _
    // Predicated region
    $region30: #{tpu_custom_call.1} parent=1 // pred_check
      _
    $region31: #{tpu_custom_call.1} parent=1 // pred_check_branch
      %122 = sbr.rel (0) target = $region33
    $region32: #{tpu_custom_call.1} parent=1 // pred_region
      %124 = vsyncadd [#allocation15], 0
      %s126 = sshll.u32 %s7, 4
      %s127 = int_to_ptr.hbm [resolvable:$true] %s126
      %s128 = sshll.u32 [#allocation14], 4
      %s129 = int_to_ptr.vmem [resolvable:$true] %s128
      %131 = dma.hbm_to_vmem [thread:$0]  %s127, 16, %s129, [#allocation15]
    $region33: #{tpu_custom_call.1} parent=1 // pred_fallthru
      _
    // Predicated region
    $region34: #{tpu_custom_call.1} parent=1 // pred_check
      _
    $region35: #{tpu_custom_call.1} parent=1 // pred_check_branch
      %133 = sbr.rel (0) target = $region37
    $region36: #{tpu_custom_call.1} parent=1 // pred_region
      %135 = vsyncadd [#allocation15], 0
      %s136 = sshll.u32 %s8, 4
      %s137 = int_to_ptr.hbm [resolvable:$true] %s136
      %s138 = sshll.u32 [#allocation16], 4
      %s139 = int_to_ptr.vmem [resolvable:$true] %s138
      %144 = dma.hbm_to_vmem [thread:$0]  %s137, 256, %s139, [#allocation15], 64, 64, 4
    $region37: #{tpu_custom_call.1} parent=1 // pred_fallthru
      _
    // Predicated region
    $region38: #{tpu_custom_call.1} parent=1 // pred_check
      _
    $region39: #{tpu_custom_call.1} parent=1 // pred_check_branch
      %146 = sbr.rel (0) target = $region41
    $region40: #{tpu_custom_call.1} parent=1 // pred_region
      _
    $region41: #{tpu_custom_call.1} parent=1 // pred_fallthru
      _
    // Predicated region
    $region42: #{tpu_custom_call.1} parent=1 // pred_check
      _
    $region43: #{tpu_custom_call.1} parent=1 // pred_check_branch
      %148 = sbr.rel (0) target = $region45
    $region44: #{tpu_custom_call.1} parent=1 // pred_region
      %150 = vsyncadd [#allocation18], 0
      %s151 = sshll.u32 %s10, 4
      %s152 = int_to_ptr.hbm [resolvable:$true] %s151
      %s153 = sshll.u32 [#allocation17], 4
      %s154 = int_to_ptr.vmem [resolvable:$true] %s153
      %159 = dma.hbm_to_vmem [thread:$0]  %s152, 256, %s154, [#allocation18], 64, 64, 4
    $region45: #{tpu_custom_call.1} parent=1 // pred_fallthru
      _
    // Predicated region
    $region46: #{tpu_custom_call.1} parent=1 // pred_check
      _
    $region47: #{tpu_custom_call.1} parent=1 // pred_check_branch
      %161 = sbr.rel (0) target = $region49
    $region48: #{tpu_custom_call.1} parent=1 // pred_region
      _
    $region49: #{tpu_custom_call.1} parent=1 // pred_fallthru
      _
    // Predicated region
    $region50: #{tpu_custom_call.1} parent=1 // pred_check
      _
    $region51: #{tpu_custom_call.1} parent=1 // pred_check_branch
      %163 = sbr.rel (0) target = $region53
    $region52: #{tpu_custom_call.1} parent=1 // pred_region
      _
    $region53: #{tpu_custom_call.1} parent=1 // pred_fallthru
      _
    // Predicated region
    $region54: #{tpu_custom_call.1} parent=1 // pred_check
      _
    $region55: #{tpu_custom_call.1} parent=1 // pred_check_branch
      %165 = sbr.rel (0) target = $region57
    $region56: #{tpu_custom_call.1} parent=1 // pred_region
      %167 = vsyncadd [#allocation18], 0
      %s168 = sshll.u32 %s13, 4
      %s169 = int_to_ptr.hbm [resolvable:$true] %s168
      %s170 = sshll.u32 [#allocation19], 4
      %s171 = int_to_ptr.vmem [resolvable:$true] %s170
      %176 = dma.hbm_to_vmem [thread:$0]  %s169, 512, %s171, [#allocation18], 64, 64, 4
    $region57: #{tpu_custom_call.1} parent=1 // pred_fallthru
      _
    // Predicated region
    $region58: #{tpu_custom_call.1} parent=1 // pred_check
      _
    $region59: #{tpu_custom_call.1} parent=1 // pred_check_branch
      %178 = sbr.rel (0) target = $region61
    $region60: #{tpu_custom_call.1} parent=1 // pred_region
      %180 = vsyncadd [#allocation21], 0
      %s181 = sshll.u32 %s14, 4
      %s182 = int_to_ptr.hbm [resolvable:$true] %s181
      %s183 = sshll.u32 [#allocation20], 4
      %s184 = int_to_ptr.vmem [resolvable:$true] %s183
      %189 = dma.hbm_to_vmem [thread:$0]  %s182, 128, %s184, [#allocation21], 64, 64, 4
    $region61: #{tpu_custom_call.1} parent=1 // pred_fallthru
      _
    // Predicated region
    $region62: #{tpu_custom_call.1} parent=1 // pred_check
      _
    $region63: #{tpu_custom_call.1} parent=1 // pred_check_branch
      %191 = sbr.rel (0) target = $region65
    $region64: #{tpu_custom_call.1} parent=1 // pred_region
      _
    $region65: #{tpu_custom_call.1} parent=1 // pred_fallthru
      _
    // Predicated region
    $region66: #{tpu_custom_call.1} parent=1 // pred_check
      _
    $region67: #{tpu_custom_call.1} parent=1 // pred_check_branch
      %193 = sbr.rel (0) target = $region69
    $region68: #{tpu_custom_call.1} parent=1 // pred_region
      %195 = dma.done [#allocation3], 256
    $region69: #{tpu_custom_call.1} parent=1 // pred_fallthru
      _
    // Predicated region
    $region70: #{tpu_custom_call.1} parent=1 // pred_check
      _
    $region71: #{tpu_custom_call.1} parent=1 // pred_check_branch
      %197 = sbr.rel (0) target = $region73
    $region72: #{tpu_custom_call.1} parent=1 // pred_region
      %199 = dma.done [#allocation6], 256
    $region73: #{tpu_custom_call.1} parent=1 // pred_fallthru
      _
    // Predicated region
    $region74: #{tpu_custom_call.1} parent=1 // pred_check
      _
    $region75: #{tpu_custom_call.1} parent=1 // pred_check_branch
      %201 = sbr.rel (0) target = $region77
    $region76: #{tpu_custom_call.1} parent=1 // pred_region
      %203 = dma.done [#allocation6], 256
    $region77: #{tpu_custom_call.1} parent=1 // pred_fallthru
      _
    // Predicated region
    $region78: #{tpu_custom_call.1} parent=1 // pred_check
      _
    $region79: #{tpu_custom_call.1} parent=1 // pred_check_branch
      %205 = sbr.rel (0) target = $region81
    $region80: #{tpu_custom_call.1} parent=1 // pred_region
      %207 = dma.done [#allocation9], 256
    $region81: #{tpu_custom_call.1} parent=1 // pred_fallthru
      _
    // Predicated region
    $region82: #{tpu_custom_call.1} parent=1 // pred_check
      _
    $region83: #{tpu_custom_call.1} parent=1 // pred_check_branch
      %209 = sbr.rel (0) target = $region85
    $region84: #{tpu_custom_call.1} parent=1 // pred_region
      %211 = dma.done [#allocation9], 128
    $region85: #{tpu_custom_call.1} parent=1 // pred_fallthru
      _
    // Predicated region
    $region86: #{tpu_custom_call.1} parent=1 // pred_check
      _
    $region87: #{tpu_custom_call.1} parent=1 // pred_check_branch
      %213 = sbr.rel (0) target = $region89
    $region88: #{tpu_custom_call.1} parent=1 // pred_region
      %215 = dma.done [#allocation12], 256
    $region89: #{tpu_custom_call.1} parent=1 // pred_fallthru
      _
    // Predicated region
    $region90: #{tpu_custom_call.1} parent=1 // pred_check
      _
    $region91: #{tpu_custom_call.1} parent=1 // pred_check_branch
      %217 = sbr.rel (0) target = $region93
    $region92: #{tpu_custom_call.1} parent=1 // pred_region
      %219 = dma.done [#allocation12], 16
    $region93: #{tpu_custom_call.1} parent=1 // pred_fallthru
      _
    // Predicated region
    $region94: #{tpu_custom_call.1} parent=1 // pred_check
      _
    $region95: #{tpu_custom_call.1} parent=1 // pred_check_branch
      %221 = sbr.rel (0) target = $region97
    $region96: #{tpu_custom_call.1} parent=1 // pred_region
      %223 = dma.done [#allocation15], 16
    $region97: #{tpu_custom_call.1} parent=1 // pred_fallthru
      _
    // Predicated region
    $region98: #{tpu_custom_call.1} parent=1 // pred_check
      _
    $region99: #{tpu_custom_call.1} parent=1 // pred_check_branch
      %225 = sbr.rel (0) target = $region101
    $region100: #{tpu_custom_call.1} parent=1 // pred_region
      %227 = dma.done [#allocation15], 256
    $region101: #{tpu_custom_call.1} parent=1 // pred_fallthru
      _
    // Predicated region
    $region102: #{tpu_custom_call.1} parent=1 // pred_check
      _
    $region103: #{tpu_custom_call.1} parent=1 // pred_check_branch
      %229 = sbr.rel (0) target = $region105
    $region104: #{tpu_custom_call.1} parent=1 // pred_region
      %231 = dma.done [#allocation18], 256
    $region105: #{tpu_custom_call.1} parent=1 // pred_fallthru
      _
    // Predicated region
    $region106: #{tpu_custom_call.1} parent=1 // pred_check
      _
    $region107: #{tpu_custom_call.1} parent=1 // pred_check_branch
      %233 = sbr.rel (0) target = $region109
    $region108: #{tpu_custom_call.1} parent=1 // pred_region
      %235 = dma.done [#allocation18], 512
    $region109: #{tpu_custom_call.1} parent=1 // pred_fallthru
      _
    // Predicated region
    $region110: #{tpu_custom_call.1} parent=1 // pred_check
      _
    $region111: #{tpu_custom_call.1} parent=1 // pred_check_branch
      %237 = sbr.rel (0) target = $region113
    $region112: #{tpu_custom_call.1} parent=1 // pred_region
      %239 = dma.done [#allocation21], 128
    $region113: #{tpu_custom_call.1} parent=1 // pred_fallthru
      _
    %v241 = vld [vmem:[#allocation2] sm:$0xff]
    %v242 = vld [vmem:[#allocation2 + $0x8] sm:$0xff]
    %v243 = vld [vmem:[#allocation5] sm:$0xff]
    %v244 = vld [vmem:[#allocation5 + $0x8] sm:$0xff]
    %v245 = vld [vmem:[#allocation7] sm:$0xff]
    %v246 = vld [vmem:[#allocation7 + $0x8] sm:$0xff]
    %v247 = vpack.c.bf16 %v242, %v241
    %v248 = vpack.c.bf16 %v244, %v243
    %v249 = vpack.c.bf16 %v246, %v245
    %v250 = vld [vmem:[#allocation8] sm:$0xf]
    %v251 = vld [vmem:[#allocation8 + $0x4] sm:$0xf]
    %v252 = vld [vmem:[#allocation8 + $0x8] sm:$0xf]
    %v253 = vld [vmem:[#allocation8 + $0xc] sm:$0xf]
    %v254 = vld [vmem:[#allocation10] sm:$0xf]
    %v255 = vld [vmem:[#allocation10 + $0x4] sm:$0xf]
    %v258 = vunpack.c.l.b16 %v254
    %v259 = vunpack.c.l.b16 %v255
    %v260 = vpack.c.b16 %v259, %v258
    %vm262 = vcmask 130048
    %v264 = vsel %vm262, %v249, 0
    %266 = vmatpush.bf16.msra.mxu0 0
    %267 = vmatpush.bf16.msra.mxu0 0
    %268 = vmatpush.bf16.msra.mxu0 0
    %269 = vmatpush.bf16.msra.mxu0 0
    %270 = vmatpush.bf16.msra.mxu0 0
    %271 = vmatpush.bf16.msra.mxu0 0
    %272 = vmatpush.bf16.msra.mxu0 0
    %273 = vmatpush.bf16.msra.mxu0 %v260
    %274 = vmatmul.bf16.gmra.mxu0 %v264
    %v275 = vpop.f32.mrf.mxu0
    %v276 = vadd.f32 0.0, %v275
    %v277 = vpop.f32.mrf.mxu0
    %v278 = vadd.f32 0.0, %v277
    %279 = vdwg.mxu0
    %v284 = vunpack.c.l.b16 %v250
    %v285 = vunpack.c.l.b16 %v251
    %v286 = vunpack.c.l.b16 %v252
    %v287 = vunpack.c.l.b16 %v253
    %v288 = vpack.c.b16 %v285, %v284
    %v289 = vpack.c.b16 %v287, %v286
    %vm292 = vcmask 261120
    %v294 = vsel %vm292, %v248, 0
    %296 = vmatpush.bf16.msra.mxu0 0
    %297 = vmatpush.bf16.msra.mxu0 0
    %298 = vmatpush.bf16.msra.mxu0 0
    %299 = vmatpush.bf16.msra.mxu0 0
    %300 = vmatpush.bf16.msra.mxu0 0
    %301 = vmatpush.bf16.msra.mxu0 0
    %302 = vmatpush.bf16.msra.mxu0 %v289
    %303 = vmatpush.bf16.msra.mxu0 %v288
    %304 = vmatmul.bf16.gmra.mxu0 %v294
    %v305 = vpop.f32.mrf.mxu0
    %v306 = vadd.f32 %v276, %v305
    %v307 = vpop.f32.mrf.mxu0
    %v308 = vadd.f32 %v278, %v307
    %309 = vdwg.mxu0
    %v310 = vld [vmem:[#allocation13] sm:$0x1]
    %v312 = vperm.slane %v310, 0
    %v314 = vadd.f32 %v306, %v312
    %v315 = vadd.f32 %v308, %v312
    %v316 = vld [vmem:[#allocation11] sm:$0xf]
    %v317 = vld [vmem:[#allocation11 + $0x4] sm:$0xf]
    %v318 = vld [vmem:[#allocation11 + $0x8] sm:$0xf]
    %v319 = vld [vmem:[#allocation11 + $0xc] sm:$0xf]
    %v324 = vunpack.c.l.b16 %v316
    %v325 = vunpack.c.l.b16 %v317
    %v326 = vunpack.c.l.b16 %v318
    %v327 = vunpack.c.l.b16 %v319
    %v328 = vpack.c.b16 %v325, %v324
    %v329 = vpack.c.b16 %v327, %v326
    %v333 = vsel %vm292, %v247, 0
    %335 = vmatpush.bf16.msra.mxu0 0
    %336 = vmatpush.bf16.msra.mxu0 0
    %337 = vmatpush.bf16.msra.mxu0 0
    %338 = vmatpush.bf16.msra.mxu0 0
    %339 = vmatpush.bf16.msra.mxu0 0
    %340 = vmatpush.bf16.msra.mxu0 0
    %341 = vmatpush.bf16.msra.mxu0 %v329
    %342 = vmatpush.bf16.msra.mxu0 %v328
    %343 = vmatmul.bf16.gmra.mxu0 %v333
    %v344 = vpop.f32.mrf.mxu0
    %v345 = vadd.f32 0.0, %v344
    %v346 = vpop.f32.mrf.mxu0
    %v347 = vadd.f32 0.0, %v346
    %348 = vdwg.mxu0
    %v349 = vadd.f32 %v314, %v345
    %v350 = vadd.f32 %v315, %v347
    %v351 = vxor.u32 %v349, 2147483648
    %v352 = vxor.u32 %v350, 2147483648
    %v353 = vmul.f32 %v351, 1.442695
    %v354 = vpow.pop %v353
    %v355 = vmul.f32 %v352, 1.442695
    %v356 = vpow.pop %v355
    %v357 = vadd.f32 %v354, 1.0
    %v358 = vadd.f32 %v356, 1.0
    %v359 = vrcp.pop %v357
    %v360 = vmul.f32 %v357, %v359
    %v361 = vsub.f32 1.0, %v360
    %v362 = vmul.f32 %v359, %v361
    %v363 = vadd.f32 %v359, %v362
    %vm364 = vweird.f32 %v357
    %vm365 = vweird.f32 %v359
    %vm366 = vmor %vm364, %vm365
    %v367 = vsel %vm366, %v359, %v363
    %v368 = vand.u32 2147483647, %v357
    %vm369 = vcmp.eq.f32.partialorder %v368, 8.507059e+37
    %v370 = vand.u32 %v357, 2147483648
    %v371 = vor.u32 1.1754944e-38, %v370
    %v372 = vsel %vm369, %v371, %v367
    %v373 = vmul.f32 1.0, %v372
    %v374 = vrcp.pop %v358
    %v375 = vmul.f32 %v358, %v374
    %v376 = vsub.f32 1.0, %v375
    %v377 = vmul.f32 %v374, %v376
    %v378 = vadd.f32 %v374, %v377
    %vm379 = vweird.f32 %v358
    %vm380 = vweird.f32 %v374
    %vm381 = vmor %vm379, %vm380
    %v382 = vsel %vm381, %v374, %v378
    %v383 = vand.u32 2147483647, %v358
    %vm384 = vcmp.eq.f32.partialorder %v383, 8.507059e+37
    %v385 = vand.u32 %v358, 2147483648
    %v386 = vor.u32 1.1754944e-38, %v385
    %v387 = vsel %vm384, %v386, %v382
    %v388 = vmul.f32 1.0, %v387
    %v389 = vld [vmem:[#allocation14] sm:$0x1]
    %v391 = vperm.slane %v389, 0
    %392 = vrot.lane.b32.xlu0 %v391, 64
    %v393 = vpop.permute.xlu0 %392
    %v395 = vadd.f32 %v345, %v393
    %v396 = vadd.f32 %v347, %v393
    %399 = vrot.lane.b32.xlu0 %v395, 64
    %v400 = vpop.permute.xlu0 %399
    %401 = vrot.lane.b32.xlu0 %v396, 64
    %v402 = vpop.permute.xlu0 %401
    %v405 = vmul.f32 %v373, %v400
    %v406 = vmul.f32 %v388, %v402
    %409 = vrot.lane.b32.xlu0 %v405, 64
    %v410 = vpop.permute.xlu0 %409
    %411 = vrot.lane.b32.xlu0 %v406, 64
    %v412 = vpop.permute.xlu0 %411
    %v415 = vadd.f32 %v314, %v410
    %v416 = vadd.f32 %v315, %v412
    %v417 = vtanh.pop %v415
    %v418 = vtanh.pop %v416
    %v419 = vsub.f32 1.0, %v373
    %v420 = vsub.f32 1.0, %v388
    %423 = vrot.lane.b32.xlu0 %v417, 96
    %v424 = vpop.permute.xlu0 %423
    %425 = vrot.lane.b32.xlu0 %v418, 96
    %v426 = vpop.permute.xlu0 %425
    %v429 = vmul.f32 %v419, %v424
    %v430 = vmul.f32 %v420, %v426
    %433 = vrot.lane.b32.xlu0 %v241, 32
    %v434 = vpop.permute.xlu0 %433
    %435 = vrot.lane.b32.xlu0 %v242, 32
    %v436 = vpop.permute.xlu0 %435
    %v439 = vmul.f32 %v373, %v434
    %v440 = vmul.f32 %v388, %v436
    %v441 = vadd.f32 %v429, %v439
    %v442 = vadd.f32 %v430, %v440
    %v443 = vld [vmem:[#allocation16] sm:$0xf]
    %v444 = vld [vmem:[#allocation16 + $0x4] sm:$0xf]
    %v445 = vld [vmem:[#allocation16 + $0x8] sm:$0xf]
    %v446 = vld [vmem:[#allocation16 + $0xc] sm:$0xf]
    %v447 = vld [vmem:[%s9] sm:$0xf]
    %v448 = vld [vmem:[%s9 + $0x4] sm:$0xf]
    %v451 = vunpack.c.l.b16 %v447
    %v452 = vunpack.c.l.b16 %v448
    %v453 = vpack.c.b16 %v452, %v451
    %455 = vmatpush.bf16.msra.mxu0 0
    %456 = vmatpush.bf16.msra.mxu0 0
    %457 = vmatpush.bf16.msra.mxu0 0
    %458 = vmatpush.bf16.msra.mxu0 0
    %459 = vmatpush.bf16.msra.mxu0 0
    %460 = vmatpush.bf16.msra.mxu0 0
    %461 = vmatpush.bf16.msra.mxu0 0
    %462 = vmatpush.bf16.msra.mxu0 %v453
    %463 = vmatmul.bf16.gmra.mxu0 %v264
    %v464 = vpop.f32.mrf.mxu0
    %v465 = vadd.f32 0.0, %v464
    %v466 = vpop.f32.mrf.mxu0
    %v467 = vadd.f32 0.0, %v466
    %468 = vdwg.mxu0
    %v473 = vunpack.c.l.b16 %v443
    %v474 = vunpack.c.l.b16 %v444
    %v475 = vunpack.c.l.b16 %v445
    %v476 = vunpack.c.l.b16 %v446
    %v477 = vpack.c.b16 %v474, %v473
    %v478 = vpack.c.b16 %v476, %v475
    %481 = vmatpush.bf16.msra.mxu0 0
    %482 = vmatpush.bf16.msra.mxu0 0
    %483 = vmatpush.bf16.msra.mxu0 0
    %484 = vmatpush.bf16.msra.mxu0 0
    %485 = vmatpush.bf16.msra.mxu0 0
    %486 = vmatpush.bf16.msra.mxu0 0
    %487 = vmatpush.bf16.msra.mxu0 %v478
    %488 = vmatpush.bf16.msra.mxu0 %v477
    %489 = vmatmul.bf16.gmra.mxu0 %v333
    %v490 = vpop.f32.mrf.mxu0
    %v491 = vadd.f32 %v465, %v490
    %v492 = vpop.f32.mrf.mxu0
    %v493 = vadd.f32 %v467, %v492
    %494 = vdwg.mxu0
    %v495 = vld [vmem:[%s11] sm:$0x1]
    %v497 = vperm.slane %v495, 0
    %v499 = vadd.f32 %v491, %v497
    %v500 = vadd.f32 %v493, %v497
    %v501 = vld [vmem:[#allocation17] sm:$0xf]
    %v502 = vld [vmem:[#allocation17 + $0x4] sm:$0xf]
    %v503 = vld [vmem:[#allocation17 + $0x8] sm:$0xf]
    %v504 = vld [vmem:[#allocation17 + $0xc] sm:$0xf]
    %v509 = vunpack.c.l.b16 %v501
    %v510 = vunpack.c.l.b16 %v502
    %v511 = vunpack.c.l.b16 %v503
    %v512 = vunpack.c.l.b16 %v504
    %v513 = vpack.c.b16 %v510, %v509
    %v514 = vpack.c.b16 %v512, %v511
    %517 = vmatpush.bf16.msra.mxu0 0
    %518 = vmatpush.bf16.msra.mxu0 0
    %519 = vmatpush.bf16.msra.mxu0 0
    %520 = vmatpush.bf16.msra.mxu0 0
    %521 = vmatpush.bf16.msra.mxu0 0
    %522 = vmatpush.bf16.msra.mxu0 0
    %523 = vmatpush.bf16.msra.mxu0 %v514
    %524 = vmatpush.bf16.msra.mxu0 %v513
    %525 = vmatmul.bf16.gmra.mxu0 %v294
    %v526 = vpop.f32.mrf.mxu0
    %v527 = vadd.f32 0.0, %v526
    %v528 = vpop.f32.mrf.mxu0
    %v529 = vadd.f32 0.0, %v528
    %530 = vdwg.mxu0
    %v531 = vadd.f32 %v499, %v527
    %v532 = vadd.f32 %v500, %v529
    %v533 = vxor.u32 %v531, 2147483648
    %v534 = vxor.u32 %v532, 2147483648
    %v535 = vmul.f32 %v533, 1.442695
    %v536 = vpow.pop %v535
    %v537 = vmul.f32 %v534, 1.442695
    %v538 = vpow.pop %v537
    %v539 = vadd.f32 %v536, 1.0
    %v540 = vadd.f32 %v538, 1.0
    %v541 = vrcp.pop %v539
    %v542 = vmul.f32 %v539, %v541
    %v543 = vsub.f32 1.0, %v542
    %v544 = vmul.f32 %v541, %v543
    %v545 = vadd.f32 %v541, %v544
    %vm546 = vweird.f32 %v539
    %vm547 = vweird.f32 %v541
    %vm548 = vmor %vm546, %vm547
    %v549 = vsel %vm548, %v541, %v545
    %v550 = vand.u32 2147483647, %v539
    %vm551 = vcmp.eq.f32.partialorder %v550, 8.507059e+37
    %v552 = vand.u32 %v539, 2147483648
    %v553 = vor.u32 1.1754944e-38, %v552
    %v554 = vsel %vm551, %v553, %v549
    %v555 = vmul.f32 1.0, %v554
    %v556 = vrcp.pop %v540
    %v557 = vmul.f32 %v540, %v556
    %v558 = vsub.f32 1.0, %v557
    %v559 = vmul.f32 %v556, %v558
    %v560 = vadd.f32 %v556, %v559
    %vm561 = vweird.f32 %v540
    %vm562 = vweird.f32 %v556
    %vm563 = vmor %vm561, %vm562
    %v564 = vsel %vm563, %v556, %v560
    %v565 = vand.u32 2147483647, %v540
    %vm566 = vcmp.eq.f32.partialorder %v565, 8.507059e+37
    %v567 = vand.u32 %v540, 2147483648
    %v568 = vor.u32 1.1754944e-38, %v567
    %v569 = vsel %vm566, %v568, %v564
    %v570 = vmul.f32 1.0, %v569
    %v571 = vld [vmem:[%s12] sm:$0x1]
    %v573 = vperm.slane %v571, 0
    %574 = vrot.lane.b32.xlu0 %v573, 64
    %v575 = vpop.permute.xlu0 %574
    %v577 = vadd.f32 %v527, %v575
    %v578 = vadd.f32 %v529, %v575
    %581 = vrot.lane.b32.xlu0 %v577, 64
    %v582 = vpop.permute.xlu0 %581
    %583 = vrot.lane.b32.xlu0 %v578, 64
    %v584 = vpop.permute.xlu0 %583
    %v587 = vmul.f32 %v555, %v582
    %v588 = vmul.f32 %v570, %v584
    %591 = vrot.lane.b32.xlu0 %v587, 64
    %v592 = vpop.permute.xlu0 %591
    %593 = vrot.lane.b32.xlu0 %v588, 64
    %v594 = vpop.permute.xlu0 %593
    %v597 = vadd.f32 %v499, %v592
    %v598 = vadd.f32 %v500, %v594
    %v599 = vtanh.pop %v597
    %v600 = vtanh.pop %v598
    %v601 = vsub.f32 1.0, %v555
    %v602 = vsub.f32 1.0, %v570
    %605 = vrot.lane.b32.xlu0 %v599, 96
    %v606 = vpop.permute.xlu0 %605
    %607 = vrot.lane.b32.xlu0 %v600, 96
    %v608 = vpop.permute.xlu0 %607
    %v611 = vmul.f32 %v601, %v606
    %v612 = vmul.f32 %v602, %v608
    %615 = vrot.lane.b32.xlu0 %v243, 32
    %v616 = vpop.permute.xlu0 %615
    %617 = vrot.lane.b32.xlu0 %v244, 32
    %v618 = vpop.permute.xlu0 %617
    %v621 = vmul.f32 %v555, %v616
    %v622 = vmul.f32 %v570, %v618
    %v623 = vadd.f32 %v611, %v621
    %v624 = vadd.f32 %v612, %v622
    %627 = vrot.lane.b32.xlu0 %v441, 96
    %v628 = vpop.permute.xlu0 %627
    %629 = vrot.lane.b32.xlu0 %v442, 96
    %v630 = vpop.permute.xlu0 %629
    %v633 = vsel %vm292, %v628, %v623
    %v634 = vsel %vm292, %v630, %v624
    %vm635 = vcmask 523264
    %636 = vst.msk [vmem:[#allocation22] sm:$0xff] %vm635, %v633
    %637 = vst.msk [vmem:[#allocation22 + $0x8] sm:$0xff] %vm635, %v634
    %v638 = vpack.c.bf16 %v442, %v441
    %v639 = vpack.c.bf16 %v624, %v623
    %s640 = scalar_lea.vmem [#allocation19], 16
    %v641 = vld [vmem:[%s640] sm:$0xf]
    %v642 = vld [vmem:[%s640 + $0x4] sm:$0xf]
    %v643 = vld [vmem:[%s640 + $0x8] sm:$0xf]
    %v644 = vld [vmem:[%s640 + $0xc] sm:$0xf]
    %646 = vrot.lane.b32.xlu0 %v639, 96
    %v647 = vpop.permute.xlu0 %646
    %v652 = vunpack.c.l.b16 %v641
    %v653 = vunpack.c.l.b16 %v642
    %v654 = vunpack.c.l.b16 %v643
    %v655 = vunpack.c.l.b16 %v644
    %v656 = vpack.c.b16 %v653, %v652
    %v657 = vpack.c.b16 %v655, %v654
    %v661 = vsel %vm292, %v647, 0
    %663 = vmatpush.bf16.msra.mxu0 0
    %664 = vmatpush.bf16.msra.mxu0 0
    %665 = vmatpush.bf16.msra.mxu0 0
    %666 = vmatpush.bf16.msra.mxu0 0
    %667 = vmatpush.bf16.msra.mxu0 0
    %668 = vmatpush.bf16.msra.mxu0 0
    %669 = vmatpush.bf16.msra.mxu0 %v657
    %670 = vmatpush.bf16.msra.mxu0 %v656
    %671 = vmatmul.bf16.gmra.mxu0 %v661
    %v672 = vpop.f32.mrf.mxu0
    %v673 = vadd.f32 0.0, %v672
    %v674 = vpop.f32.mrf.mxu0
    %v675 = vadd.f32 0.0, %v674
    %676 = vdwg.mxu0
    %v677 = vld [vmem:[#allocation19] sm:$0xf]
    %v678 = vld [vmem:[#allocation19 + $0x4] sm:$0xf]
    %v679 = vld [vmem:[#allocation19 + $0x8] sm:$0xf]
    %v680 = vld [vmem:[#allocation19 + $0xc] sm:$0xf]
    %682 = vrot.lane.b32.xlu0 %v638, 96
    %v683 = vpop.permute.xlu0 %682
    %v688 = vunpack.c.l.b16 %v677
    %v689 = vunpack.c.l.b16 %v678
    %v690 = vunpack.c.l.b16 %v679
    %v691 = vunpack.c.l.b16 %v680
    %v692 = vpack.c.b16 %v689, %v688
    %v693 = vpack.c.b16 %v691, %v690
    %v697 = vsel %vm292, %v683, 0
    %699 = vmatpush.bf16.msra.mxu0 0
    %700 = vmatpush.bf16.msra.mxu0 0
    %701 = vmatpush.bf16.msra.mxu0 0
    %702 = vmatpush.bf16.msra.mxu0 0
    %703 = vmatpush.bf16.msra.mxu0 0
    %704 = vmatpush.bf16.msra.mxu0 0
    %705 = vmatpush.bf16.msra.mxu0 %v693
    %706 = vmatpush.bf16.msra.mxu0 %v692
    %707 = vmatmul.bf16.gmra.mxu0 %v697
    %v708 = vpop.f32.mrf.mxu0
    %v709 = vadd.f32 0.0, %v708
    %v710 = vpop.f32.mrf.mxu0
    %v711 = vadd.f32 0.0, %v710
    %712 = vdwg.mxu0
    %715 = vrot.lane.b32.xlu0 %v709, 32
    %v716 = vpop.permute.xlu0 %715
    %717 = vrot.lane.b32.xlu0 %v711, 32
    %v718 = vpop.permute.xlu0 %717
    %v721 = vsel %vm292, %v673, %v716
    %v722 = vsel %vm292, %v675, %v718
    %v723 = vld [vmem:[#allocation20] sm:$0xf]
    %v724 = vld [vmem:[#allocation20 + $0x4] sm:$0xf]
    %v727 = vunpack.c.l.b16 %v723
    %v728 = vunpack.c.l.b16 %v724
    %v729 = vpack.c.b16 %v728, %v727
    %731 = vmatpush.bf16.msra.mxu0 0
    %732 = vmatpush.bf16.msra.mxu0 0
    %733 = vmatpush.bf16.msra.mxu0 0
    %734 = vmatpush.bf16.msra.mxu0 0
    %735 = vmatpush.bf16.msra.mxu0 0
    %736 = vmatpush.bf16.msra.mxu0 0
    %737 = vmatpush.bf16.msra.mxu0 0
    %738 = vmatpush.bf16.msra.mxu0 %v729
    %739 = vmatmul.bf16.gmra.mxu0 %v264
    %v740 = vpop.f32.mrf.mxu0
    %v741 = vadd.f32 0.0, %v740
    %v742 = vpop.f32.mrf.mxu0
    %v743 = vadd.f32 0.0, %v742
    %744 = vdwg.mxu0
    %v745 = vadd.f32 %v721, %v741
    %v746 = vadd.f32 %v722, %v743
    %v747 = vld [vmem:[%s15] sm:$0x1]
    %v749 = vperm.slane %v747, 0
    %v751 = vadd.f32 %v745, %v749
    %v752 = vadd.f32 %v746, %v749
    %v753 = vpack.c.bf16 %v751, %v751
    %v754 = vpack.c.bf16 %v752, %v752
    %vm755 = vcmask 519168
    %756 = vst.msk [vmem:[#allocation23] sm:$0xf] %vm755, %v753
    %757 = vst.msk [vmem:[#allocation23 + $0x4] sm:$0xf] %vm755, %v754
    // Predicated region
    $region114: #{tpu_custom_call.1} parent=1 // pred_check
      _
    $region115: #{tpu_custom_call.1} parent=1 // pred_check_branch
      %759 = sbr.rel (0) target = $region117
    $region116: #{tpu_custom_call.1} parent=1 // pred_region
      %761 = vsyncadd [#allocation4], 0
      %s762 = sshll.u32 [#allocation22], 4
      %s763 = int_to_ptr.vmem [resolvable:$true] %s762
      %s764 = sshll.u32 %s16, 4
      %s765 = int_to_ptr.hbm [resolvable:$true] %s764
      %770 = dma.vmem_to_hbm [thread:$0]  %s763, 256, %s765, [#allocation4], 128, 128, 8
    $region117: #{tpu_custom_call.1} parent=1 // pred_fallthru
      _
    // Predicated region
    $region118: #{tpu_custom_call.1} parent=1 // pred_check
      _
    $region119: #{tpu_custom_call.1} parent=1 // pred_check_branch
      %772 = sbr.rel (0) target = $region121
    $region120: #{tpu_custom_call.1} parent=1 // pred_region
      %774 = vsyncadd [#allocation24], 0
      %s775 = sshll.u32 [#allocation23], 4
      %s776 = int_to_ptr.vmem [resolvable:$true] %s775
      %s777 = sshll.u32 %s17, 4
      %s778 = int_to_ptr.hbm [resolvable:$true] %s777
      %783 = dma.vmem_to_hbm [thread:$0]  %s776, 128, %s778, [#allocation24], 64, 64, 4
    $region121: #{tpu_custom_call.1} parent=1 // pred_fallthru
      _
    // Predicated region
    $region122: #{tpu_custom_call.1} parent=1 // pred_check
      _
    $region123: #{tpu_custom_call.1} parent=1 // pred_check_branch
      %785 = sbr.rel (0) target = $region125
    $region124: #{tpu_custom_call.1} parent=1 // pred_region
      %787 = dma.done [#allocation4], 256
    $region125: #{tpu_custom_call.1} parent=1 // pred_fallthru
      _
    // Predicated region
    $region126: #{tpu_custom_call.1} parent=1 // pred_check
      _
    $region127: #{tpu_custom_call.1} parent=1 // pred_check_branch
      %789 = sbr.rel (0) target = $region129
    $region128: #{tpu_custom_call.1} parent=1 // pred_region
      %791 = dma.done [#allocation24], 128
    $region129: #{tpu_custom_call.1} parent=1 // pred_fallthru
      _
    %792 = vsyncpa [#allocation3], 1
    %793 = vsyncpa [#allocation6], 1
    %794 = vsyncpa [#allocation9], 1
    %795 = vsyncpa [#allocation12], 1
    %796 = vsyncpa [#allocation15], 1
    %797 = vsyncpa [#allocation18], 1
    %798 = vsyncpa [#allocation21], 1
    %799 = vsyncpa [#allocation4], 1
    %800 = vsyncpa [#allocation24], 1

</llo_original>
